<compile_context>
chip_gen: v6e
topology: v6e:2x2x1
jax: 0.10.0
libtpu: 0.0.40
codegen_flags: <defaults>
</compile_context>

<pallas_src>
import jax
import jax.numpy as jnp
import numpy as np
from jax.experimental import pallas as pl
from jax.experimental.pallas import tpu as pltpu


def fourier_kernel(x_ref, expand_ref, omega_ref, mask_ref, out_ref):
    # x_ref:      (TP, K)    packed rows: K logical scalars per packed row
    # expand_ref: (K, K*W)   constant 0/1 expansion matrix
    # omega_ref:  (1, K*W)   constant [omega, omega] tiled K times
    # mask_ref:   (1, K*W)   constant 1.0 on sin lanes, 0.0 on cos lanes
    # out_ref:    (TP, K*W)  lane-dense output block (128 lanes when K*W==128)
    x = x_ref[...]
    # Expand each scalar to its W-lane group on the otherwise-idle MXU.
    x_exp = jnp.dot(x, expand_ref[...], preferred_element_type=jnp.float32)
    phase = x_exp * omega_ref[...]                    # stride-0 lane broadcast (VPU)
    sin_p = jnp.sin(phase)                            # EUP
    cos_p = jnp.cos(phase)                            # EUP
    out_ref[...] = jnp.where(mask_ref[...] > 0.5, sin_p, cos_p)  # full-vreg store


def _choose_packed_tile(p_rows, x_lanes_pad, out_lanes_pad,
                        vmem_budget_bytes=24 << 20):
    """Packed-row tile: multiple of 8, double-buffered *lane-padded* tiles fit
    the VMEM budget, and the grid keeps >= 2 steps (v7x megacore) when the
    problem is big enough."""
    # f32, double-buffered input + output tiles, lane-padded sizes.
    bytes_per_row = 2 * 4 * (x_lanes_pad + out_lanes_pad)
    max_rows = max(8, (vmem_budget_bytes // bytes_per_row) // 8 * 8)
    tp = min(8192, max_rows)
    # Keep at least 2 grid steps so ("parallel",) shards across both v7x TCs.
    half = max(8, (((p_rows + 1) // 2) + 7) // 8 * 8)
    tp = min(tp, half)
    return max(8, (tp // 8) * 8)


def fourier_features(x, omega, *, packed_row_tile=None):
    """x: (B, S, 1) f32, omega: (D,) f32 -> (B, S, 2D) f32."""
    B, S, _ = x.shape
    omega_f32 = jnp.asarray(omega, jnp.float32).reshape(-1)
    D = int(omega_f32.shape[0])
    W = 2 * D
    R = B * S

    # Fold K logical rows into one 128-lane output row when the width allows.
    K = (128 // W) if (W <= 128 and 128 % W == 0) else 1
    KW = K * W

    # Constant operands, built once in the wrapper (never re-tiled in-kernel).
    omega_tiled = jnp.tile(jnp.concatenate([omega_f32, omega_f32]), K).reshape(1, KW)
    sin_mask = jnp.tile(
        jnp.concatenate([jnp.ones((D,), jnp.float32), jnp.zeros((D,), jnp.float32)]), K
    ).reshape(1, KW)
    expand_np = np.zeros((K, KW), dtype=np.float32)
    for j in range(K):
        expand_np[j, j * W:(j + 1) * W] = 1.0
    expand = jnp.asarray(expand_np)

    # Packed-row geometry and tile choice (padded-lane VMEM accounting).
    P = -(-R // K)
    x_lanes_pad = -(-K // 128) * 128
    out_lanes_pad = -(-KW // 128) * 128
    if packed_row_tile is not None:
        TP = max(8, (int(packed_row_tile) // 8) * 8)      # enforce sublane multiple
    else:
        TP = _choose_packed_tile(P, x_lanes_pad, out_lanes_pad)
    P_pad = -(-P // TP) * TP
    R_pad = P_pad * K

    x_flat = x.reshape(R).astype(jnp.float32)
    if R_pad != R:
        # Zero padding -> sin(0)=0 / cos(0)=1 in padded rows, sliced off below.
        x_flat = jnp.pad(x_flat, (0, R_pad - R))
    x_packed = x_flat.reshape(P_pad, K)

    grid = (P_pad // TP,)

    out = pl.pallas_call(
        fourier_kernel,
        out_shape=jax.ShapeDtypeStruct((P_pad, KW), jnp.float32),
        grid=grid,
        in_specs=[
            pl.BlockSpec((TP, K), lambda i: (i, 0)),      # packed x rows
            pl.BlockSpec((K, KW), lambda i: (0, 0)),      # expansion matrix (constant)
            pl.BlockSpec((1, KW), lambda i: (0, 0)),      # tiled omega (constant)
            pl.BlockSpec((1, KW), lambda i: (0, 0)),      # sin/cos lane mask (constant)
        ],
        out_specs=pl.BlockSpec((TP, KW), lambda i: (i, 0)),
        compiler_params=pltpu.CompilerParams(
            dimension_semantics=("parallel",),            # megacore-friendly (v7x)
            vmem_limit_bytes=32 * 1024 * 1024,
        ),
        cost_estimate=pl.CostEstimate(
            flops=2 * P_pad * K * KW + P_pad * KW,
            transcendentals=2 * P_pad * KW,
            bytes_accessed=4 * (P_pad * K + P_pad * KW + 3 * KW),
        ),
    )(x_packed, expand, omega_tiled, sin_mask)

    # (P_pad, K*W) -> (P_pad*K, W) is a free contiguous reinterpretation.
    return out.reshape(P_pad * K, W)[:R].reshape(B, S, W)


if __name__ == "__main__":
    # Deterministic "config": fourier_scales = [0, 1, ..., 7] -> D = 8, output_dim = 16
    fourier_scales = jnp.arange(8, dtype=jnp.float32)
    omega = 1.0 / (2.0 ** fourier_scales)                 # buffer 'omega', shape (8,)

    # Deterministic example input, shape (B, S, 1) = (2, 8, 1)
    key = jax.random.PRNGKey(0)
    x = jax.random.normal(key, (2, 8, 1), dtype=jnp.float32)

    out = fourier_features(x, omega)
    out = jax.block_until_ready(out)

    # Pure-JAX reference check
    phase_ref = x[..., 0][:, :, None] * omega[None, None, :]
    ref = jnp.concatenate([jnp.sin(phase_ref), jnp.cos(phase_ref)], axis=-1)
    np.testing.assert_allclose(np.asarray(out), np.asarray(ref), atol=1e-5, rtol=1e-5)

    assert out.shape == (2, 8, 16)
    print("KERNEL_OK")
</pallas_src>

<mosaic_0001>
module attributes {stable_mosaic.version = 11 : i64} {
  func.func @fourier_kernel(%arg0: i32, %arg1: memref<8x8xf32, #tpu.memory_space<vmem>>, %arg2: memref<8x128xf32, #tpu.memory_space<vmem>>, %arg3: memref<1x128xf32, #tpu.memory_space<vmem>>, %arg4: memref<1x128xf32, #tpu.memory_space<vmem>>, %arg5: memref<8x128xf32, #tpu.memory_space<vmem>>) attributes {dimension_semantics = [#tpu.dimension_semantics<parallel>], iteration_bounds = array<i64: 1>, scalar_prefetch = 0 : i64, scratch_operands = 0 : i64, tpu.core_type = #tpu.core_type<tc>, window_params = [{transform_indices = @transform_0, window_bounds = array<i64: 8, 8>}, {pipeline_mode = #tpu.pipeline_mode<synchronous>, transform_indices = @transform_1, window_bounds = array<i64: 8, 128>}, {pipeline_mode = #tpu.pipeline_mode<synchronous>, transform_indices = @transform_2, window_bounds = array<i64: 1, 128>}, {pipeline_mode = #tpu.pipeline_mode<synchronous>, transform_indices = @transform_3, window_bounds = array<i64: 1, 128>}, {transform_indices = @transform_4, window_bounds = array<i64: 8, 128>}]} {
    %c0 = arith.constant 0 : index
    %c0_0 = arith.constant 0 : index
    %0 = vector.load %arg1[%c0, %c0_0] : memref<8x8xf32, #tpu.memory_space<vmem>>, vector<8x8xf32>
    %c0_1 = arith.constant 0 : index
    %c0_2 = arith.constant 0 : index
    %1 = vector.load %arg2[%c0_1, %c0_2] : memref<8x128xf32, #tpu.memory_space<vmem>>, vector<8x128xf32>
    %cst = arith.constant dense<0.000000e+00> : vector<8x128xf32>
    %2 = tpu.matmul %0, %1, %cst {dimension_numbers = #tpu.dot_dimension_numbers<[1], [0], [0], [1], [0, 0, 1, 1], [], []>} : vector<8x8xf32>, vector<8x128xf32>, vector<8x128xf32> -> vector<8x128xf32>
    %c0_3 = arith.constant 0 : index
    %c0_4 = arith.constant 0 : index
    %3 = vector.load %arg3[%c0_3, %c0_4] : memref<1x128xf32, #tpu.memory_space<vmem>>, vector<1x128xf32>
    %4 = vector.broadcast %3 : vector<1x128xf32> to vector<8x128xf32>
    %5 = arith.mulf %2, %4 : vector<8x128xf32>
    %6 = math.sin %5 : vector<8x128xf32>
    %7 = math.cos %5 : vector<8x128xf32>
    %c0_5 = arith.constant 0 : index
    %c0_6 = arith.constant 0 : index
    %8 = vector.load %arg4[%c0_5, %c0_6] : memref<1x128xf32, #tpu.memory_space<vmem>>, vector<1x128xf32>
    %cst_7 = arith.constant 5.000000e-01 : f32
    %9 = vector.broadcast %cst_7 : f32 to vector<1x128xf32>
    %10 = arith.cmpf ogt, %8, %9 : vector<1x128xf32>
    %11 = vector.shape_cast %10 : vector<1x128xi1> to vector<1x128xi1>
    %12 = vector.broadcast %11 : vector<1x128xi1> to vector<8x128xi1>
    %13 = arith.select %12, %6, %7 : vector<8x128xi1>, vector<8x128xf32>
    %c0_8 = arith.constant 0 : index
    %c0_9 = arith.constant 0 : index
    %14 = vector.load %arg5[%c0_8, %c0_9] : memref<8x128xf32, #tpu.memory_space<vmem>>, vector<8x128xf32>
    tpu.vector_store %arg5[%c0_8, %c0_9], %13 {strides = array<i32>} : memref<8x128xf32, #tpu.memory_space<vmem>>, vector<8x128xf32>,
    return
  }
  func.func @transform_0(%arg0: i32) -> (i32, i32) {
    %c0_i32 = arith.constant 0 : i32
    %c0_i32_0 = arith.constant 0 : i32
    return %arg0, %c0_i32 : i32, i32
  }
  func.func @transform_1(%arg0: i32) -> (i32, i32) {
    %c0_i32 = arith.constant 0 : i32
    %c0_i32_0 = arith.constant 0 : i32
    %c0_i32_1 = arith.constant 0 : i32
    return %c0_i32, %c0_i32_0 : i32, i32
  }
  func.func @transform_2(%arg0: i32) -> (i32, i32) {
    %c0_i32 = arith.constant 0 : i32
    %c0_i32_0 = arith.constant 0 : i32
    %c0_i32_1 = arith.constant 0 : i32
    return %c0_i32, %c0_i32_0 : i32, i32
  }
  func.func @transform_3(%arg0: i32) -> (i32, i32) {
    %c0_i32 = arith.constant 0 : i32
    %c0_i32_0 = arith.constant 0 : i32
    %c0_i32_1 = arith.constant 0 : i32
    return %c0_i32, %c0_i32_0 : i32, i32
  }
  func.func @transform_4(%arg0: i32) -> (i32, i32) {
    %c0_i32 = arith.constant 0 : i32
    %c0_i32_0 = arith.constant 0 : i32
    return %arg0, %c0_i32 : i32, i32
  }
}

</mosaic_0001>

<llo_original>
// kernel: tpu_custom_call.1
$region0: #{tpu_custom_call.1}
  #allocation0 [shape = 'u32[]', space=smem, size = 0x4, offset = 0x4, fixed_abs, tag = 'smem constant byte address 0x4 - core index']
  #allocation1 [shape = 'u32[144,128]{1,0:T(1,128)}', space=vmem, size = 0x12000, scoped, tag = 'internal scratch']
  %s0 = inlined_call_operand.hbm [shape: f32[8,8], index: 0, kind: input, shape index: {}]
  %s1 = inlined_call_operand.hbm [shape: f32[8,128], index: 1, kind: input, shape index: {}]
  %s2 = inlined_call_operand.vmem [shape: f32[1,128], index: 2, kind: input, shape index: {}]
  %s3 = inlined_call_operand.vmem [shape: f32[1,128], index: 3, kind: input, shape index: {}]
  %s4 = inlined_call_operand.hbm [shape: f32[8,128], index: 4, kind: output, shape index: {}]
  %s5 = sld [smem:[#allocation0]]
  $region34: #{tpu_custom_call.1} parent=0
    _
  %s7 = ssub.s32 1, %s5
  %s8 = scalar_select 0, %s7, %s5
  $region1: #{tpu_custom_call.1} parent=0
    #allocation2 [shape = 'u8[4096]{0}', space=vmem, size = 0x1000, scoped, tag = 'input window, operand 0, single buffered']
    #allocation3 [shape = 's32[1]{0}', space=sflag, size = 0x4, scoped, tag = 'scoped memory for tpu_custom_call.1']
    #allocation4 [shape = 's32[1]{0}', space=sflag, size = 0x4, scoped, tag = 'scoped memory for tpu_custom_call.1']
    #allocation5 [shape = 'u8[4096]{0}', space=vmem, size = 0x1000, scoped, tag = 'input window, operand 1, single buffered']
    #allocation6 [shape = 's32[1]{0}', space=sflag, size = 0x4, scoped, tag = 'scoped memory for tpu_custom_call.1']
    #allocation7 [shape = 'u8[4096]{0}', space=vmem, size = 0x1000, scoped, tag = 'output window, operand 0, single buffered']
    %9 = vsyncpa [#allocation3], 0
    %10 = vsyncpa [#allocation6], 0
    %11 = vsyncpa [#allocation4], 0
    // Predicated region
    $region2: #{tpu_custom_call.1} parent=1 // pred_check
      _
    $region3: #{tpu_custom_call.1} parent=1 // pred_check_branch
      %13 = sbr.rel (0) target = $region5
    $region4: #{tpu_custom_call.1} parent=1 // pred_region
      %s15 = ssub.s32 128, 128
      %16 = vsyncadd [#allocation3], %s15
      %s18 = sshll.u32 [#allocation2], 4
      %s19 = int_to_ptr.vmem [resolvable:$true] %s18
      %21 = dma.hbm_to_vmem [thread:$0]  %s0, 128, %s19, [#allocation3]
    $region5: #{tpu_custom_call.1} parent=1 // pred_fallthru
      _
    // Predicated region
    $region6: #{tpu_custom_call.1} parent=1 // pred_check
      _
    $region7: #{tpu_custom_call.1} parent=1 // pred_check_branch
      %23 = sbr.rel (0) target = $region9
    $region8: #{tpu_custom_call.1} parent=1 // pred_region
      %s25 = ssub.s32 128, 128
      %26 = vsyncadd [#allocation6], %s25
      %s28 = sshll.u32 [#allocation5], 4
      %s29 = int_to_ptr.vmem [resolvable:$true] %s28
      %31 = dma.hbm_to_vmem [thread:$0]  %s1, 128, %s29, [#allocation6]
    $region9: #{tpu_custom_call.1} parent=1 // pred_fallthru
      _
    // Predicated region
    $region10: #{tpu_custom_call.1} parent=1 // pred_check
      _
    $region11: #{tpu_custom_call.1} parent=1 // pred_check_branch
      %33 = sbr.rel (0) target = $region13
    $region12: #{tpu_custom_call.1} parent=1 // pred_region
      _
    $region13: #{tpu_custom_call.1} parent=1 // pred_fallthru
      _
    // Predicated region
    $region14: #{tpu_custom_call.1} parent=1 // pred_check
      _
    $region15: #{tpu_custom_call.1} parent=1 // pred_check_branch
      %35 = sbr.rel (0) target = $region17
    $region16: #{tpu_custom_call.1} parent=1 // pred_region
      _
    $region17: #{tpu_custom_call.1} parent=1 // pred_fallthru
      _
    // Predicated region
    $region18: #{tpu_custom_call.1} parent=1 // pred_check
      _
    $region19: #{tpu_custom_call.1} parent=1 // pred_check_branch
      %37 = sbr.rel (0) target = $region21
    $region20: #{tpu_custom_call.1} parent=1 // pred_region
      %38 = dma.done [#allocation3], 128
    $region21: #{tpu_custom_call.1} parent=1 // pred_fallthru
      _
    // Predicated region
    $region22: #{tpu_custom_call.1} parent=1 // pred_check
      _
    $region23: #{tpu_custom_call.1} parent=1 // pred_check_branch
      %40 = sbr.rel (0) target = $region25
    $region24: #{tpu_custom_call.1} parent=1 // pred_region
      %41 = dma.done [#allocation6], 128
    $region25: #{tpu_custom_call.1} parent=1 // pred_fallthru
      _
    %v42 = vld [vmem:[#allocation2] sm:$0xff]
    %v43 = vld [vmem:[#allocation5] sm:$0xff]
    %vm44 = vcmask 64512
    %v46 = vsel %vm44, %v42, 0
    %48 = vmatprep.subr.mxu0 0.0
    %49 = vmatpush1.msra.mxu0 0.0
    %50 = vmatprep.subr.mxu0 0.0
    %51 = vmatpush1.msra.mxu0 0.0
    %52 = vmatprep.subr.mxu0 0.0
    %53 = vmatpush1.msra.mxu0 0.0
    %54 = vmatprep.subr.mxu0 0.0
    %55 = vmatpush1.msra.mxu0 0.0
    %56 = vmatprep.subr.mxu0 0.0
    %57 = vmatpush1.msra.mxu0 0.0
    %58 = vmatprep.subr.mxu0 0.0
    %59 = vmatpush1.msra.mxu0 0.0
    %60 = vmatprep.subr.mxu0 0.0
    %61 = vmatpush1.msra.mxu0 0.0
    %62 = vmatprep.subr.mxu0 0.0
    %63 = vmatpush1.msra.mxu0 0.0
    %64 = vmatprep.subr.mxu0 0.0
    %65 = vmatpush1.msra.mxu0 0.0
    %66 = vmatprep.subr.mxu0 0.0
    %67 = vmatpush1.msra.mxu0 0.0
    %68 = vmatprep.subr.mxu0 0.0
    %69 = vmatpush1.msra.mxu0 0.0
    %70 = vmatprep.subr.mxu0 0.0
    %71 = vmatpush1.msra.mxu0 0.0
    %72 = vmatprep.subr.mxu0 0.0
    %73 = vmatpush1.msra.mxu0 0.0
    %74 = vmatprep.subr.mxu0 0.0
    %75 = vmatpush1.msra.mxu0 0.0
    %76 = vmatprep.subr.mxu0 0.0
    %77 = vmatpush1.msra.mxu0 0.0
    %78 = vmatprep.subr.mxu0 0.0
    %79 = vmatpush1.msra.mxu0 %v43
    %80 = vmatprep.subr.mxu0 0.0
    %81 = vmatpush2.msra.mxu0 0.0
    %82 = vmatprep.subr.mxu0 0.0
    %83 = vmatpush2.msra.mxu0 0.0
    %84 = vmatprep.subr.mxu0 0.0
    %85 = vmatpush2.msra.mxu0 0.0
    %86 = vmatprep.subr.mxu0 0.0
    %87 = vmatpush2.msra.mxu0 0.0
    %88 = vmatprep.subr.mxu0 0.0
    %89 = vmatpush2.msra.mxu0 0.0
    %90 = vmatprep.subr.mxu0 0.0
    %91 = vmatpush2.msra.mxu0 0.0
    %92 = vmatprep.subr.mxu0 0.0
    %93 = vmatpush2.msra.mxu0 0.0
    %94 = vmatprep.subr.mxu0 0.0
    %95 = vmatpush2.msra.mxu0 0.0
    %96 = vmatprep.subr.mxu0 0.0
    %97 = vmatpush2.msra.mxu0 0.0
    %98 = vmatprep.subr.mxu0 0.0
    %99 = vmatpush2.msra.mxu0 0.0
    %100 = vmatprep.subr.mxu0 0.0
    %101 = vmatpush2.msra.mxu0 0.0
    %102 = vmatprep.subr.mxu0 0.0
    %103 = vmatpush2.msra.mxu0 0.0
    %104 = vmatprep.subr.mxu0 0.0
    %105 = vmatpush2.msra.mxu0 0.0
    %106 = vmatprep.subr.mxu0 0.0
    %107 = vmatpush2.msra.mxu0 0.0
    %108 = vmatprep.subr.mxu0 0.0
    %109 = vmatpush2.msra.mxu0 0.0
    %110 = vmatprep.subr.mxu0 0.0
    %111 = vmatpush2.msra.mxu0 0.0
    %112 = vmatprep.mubr.f32.mxu0 0.0
    %113 = vmatmul.mubr.f32.gmra.mxu0 %v46
    %v114 = vpop.f32.mrf.mxu0
    %v115 = vadd.f32 0.0, %v114
    %v116 = vpop.f32.mrf.mxu0
    %117 = vdwg.mxu0
    %v118 = vld [vmem:[%s2] sm:$0x1]
    %v120 = vlaneseq
    %v121 = vshrl.u32 %v120, 7
    %v122 = vsub.s32 0, %v121
    %v123 = vrot.slane %v118, %v122
    %v125 = vmul.f32 %v115, %v123
    %v126 = vand.u32 2147483647, %v125
    %vm127 = vcmp.le.f32.partialorder %v126, 0.7853982
    %vm128 = vcmp.lt.s32.totalorder %v125, 0
    %v129 = vand.u32 %v125, 2139095040
    %v130 = vshrl.u32 %v129, 23
    %v131 = vsub.s32 %v130, 127
    %v132 = vand.u32 2147483647, %v125
    %v133 = vand.u32 %v132, 8388607
    %v134 = vor.u32 %v133, 8388608
    %v135 = vsub.s32 0, %v134
    %v136 = vadd.s32 %v131, 1
    %vm137 = vcmp.gt.s32.totalorder %v136, 0
    %v138 = vsel %vm137, %v136, 0
    %v139 = vshrl.u32 %v138, 5
    %v140 = vand.u32 %v138, 31
    %v141 = vsub.s32 32, %v140
    %v142 = vshrl.u32 683565275, %v141
    %v143 = vshll.u32 683565275, %v140
    %v144 = vshrl.u32 2475754826, %v141
    %v145 = vor.u32 %v143, %v144
    %v146 = vshll.u32 2475754826, %v140
    %v147 = vshrl.u32 2131351028, %v141
    %v148 = vor.u32 %v146, %v147
    %v149 = vshll.u32 2131351028, %v140
    %v150 = vshrl.u32 2102212464, %v141
    %v151 = vor.u32 %v149, %v150
    %v152 = vshll.u32 2102212464, %v140
    %v153 = vshrl.u32 920167782, %v141
    %v154 = vor.u32 %v152, %v153
    %v155 = vshll.u32 920167782, %v140
    %v156 = vshrl.u32 1326507024, %v141
    %v157 = vor.u32 %v155, %v156
    %vm158 = vcmp.lt.s32.totalorder %v139, 1
    %vm159 = vcmp.lt.s32.totalorder %v139, 2
    %vm160 = vcmp.lt.s32.totalorder %v139, 3
    %vm161 = vcmp.lt.s32.totalorder %v139, 4
    %v162 = vsel %vm158, %v142, %v145
    %v163 = vsel %vm161, %v151, 2102212464
    %v164 = vsel %vm160, %v148, %v163
    %v165 = vsel %vm159, %v162, %v164
    %v166 = vsel %vm158, %v145, %v148
    %v167 = vsel %vm161, %v154, 920167782
    %v168 = vsel %vm160, %v151, %v167
    %v169 = vsel %vm159, %v166, %v168
    %v170 = vsel %vm158, %v148, %v151
    %v171 = vsel %vm161, %v157, 1326507024
    %v172 = vsel %vm160, %v154, %v171
    %v173 = vsel %vm159, %v170, %v172
    %v174 = vshll.u32 %v134, 8
    %v175 = vmul.u32.u64.compose %v174, %v173
    %v176 = vextract.low.u32 %v175
    %v177 = vextract.high.u32 %v175
    %v178 = vmul.u32.u64.compose %v174, %v169
    %v179 = vextract.low.u32 %v178
    %v180 = vextract.high.u32 %v178
    %v181 = vmul.u32 %v174, %v165
    %v182 = vadd.s32 %v177, %v179
    %vm183 = vc.u32 %v177, %v179
    %v184 = vadd.s32 %v180, 1
    %v185 = vsel %vm183, %v184, %v180
    %v186 = vadd.s32 %v181, %v185
    %v187 = vadd.s32 %v186, 536870912
    %v188 = vshrl.u32 %v187, 30
    %v189 = vshll.u32 %v188, 30
    %v190 = vsub.s32 %v186, %v189
    %vm191 = vcmp.lt.s32.totalorder %v190, 0
    %v192 = vsub.s32 0, %v190
    %v193 = vsel %vm191, %v192, %v190
    %v194 = vclz %v193
    %v195 = vsub.s32 %v194, 2
    %vm196 = vcmp.gt.s32.totalorder 0, %v195
    %v197 = vsel %vm196, 0, %v195
    %v198 = vsub.s32 32, %v197
    %v199 = vshll.u32 %v190, %v197
    %v200 = vshrl.u32 %v182, %v198
    %v201 = vor.u32 %v199, %v200
    %v202 = vsub.s32 4294967266, %v197
    %v203 = vadd.s32 %v202, 127
    %v204 = vshll.u32 %v203, 23
    %v205 = vor.u32 4788187, %v204
    %v206 = vand.u32 2147483647, %v205
    %v208 = vcvt.s32.f32 %v201
    %v209 = vmul.f32 %v208, %v206
    %v210 = vxor.u32 %v209, 2147483648
    %v211 = vsel %vm128, %v210, %v209
    %v212 = vsub.s32 4, %v188
    %v213 = vsel %vm128, %v212, %v188
    %v214 = vsel %vm127, %v125, %v211
    %v215 = vsel %vm127, 0, %v213
    %v216 = vcosq.f32.pop %v214
    %v217 = vsinq.f32.pop %v214
    %vm218 = vweird.f32 %v125
    %v219 = vadd.s32 %v215, 3
    %v220 = vand.u32 %v219, 3
    %vm221 = vcmp.lt.s32.totalorder %v220, 2
    %vm222 = vcmp.eq.s32.totalorder %v220, 0
    %v223 = vxor.u32 %v217, 2147483648
    %v224 = vsel %vm222, %v216, %v223
    %vm225 = vcmp.eq.s32.totalorder %v220, 2
    %v226 = vxor.u32 %v216, 2147483648
    %v227 = vsel %vm225, %v226, %v217
    %v228 = vsel %vm221, %v224, %v227
    %v229 = vsel %vm218, nan, %v228
    %v230 = vand.u32 2147483647, %v125
    %vm231 = vcmp.le.f32.partialorder %v230, 0.7853982
    %vm232 = vcmp.lt.s32.totalorder %v125, 0
    %v233 = vand.u32 %v125, 2139095040
    %v234 = vshrl.u32 %v233, 23
    %v235 = vsub.s32 %v234, 127
    %v236 = vand.u32 2147483647, %v125
    %v237 = vand.u32 %v236, 8388607
    %v238 = vor.u32 %v237, 8388608
    %v239 = vsub.s32 0, %v238
    %v240 = vadd.s32 %v235, 1
    %vm241 = vcmp.gt.s32.totalorder %v240, 0
    %v242 = vsel %vm241, %v240, 0
    %v243 = vshrl.u32 %v242, 5
    %v244 = vand.u32 %v242, 31
    %v245 = vsub.s32 32, %v244
    %v246 = vshrl.u32 683565275, %v245
    %v247 = vshll.u32 683565275, %v244
    %v248 = vshrl.u32 2475754826, %v245
    %v249 = vor.u32 %v247, %v248
    %v250 = vshll.u32 2475754826, %v244
    %v251 = vshrl.u32 2131351028, %v245
    %v252 = vor.u32 %v250, %v251
    %v253 = vshll.u32 2131351028, %v244
    %v254 = vshrl.u32 2102212464, %v245
    %v255 = vor.u32 %v253, %v254
    %v256 = vshll.u32 2102212464, %v244
    %v257 = vshrl.u32 920167782, %v245
    %v258 = vor.u32 %v256, %v257
    %v259 = vshll.u32 920167782, %v244
    %v260 = vshrl.u32 1326507024, %v245
    %v261 = vor.u32 %v259, %v260
    %vm262 = vcmp.lt.s32.totalorder %v243, 1
    %vm263 = vcmp.lt.s32.totalorder %v243, 2
    %vm264 = vcmp.lt.s32.totalorder %v243, 3
    %vm265 = vcmp.lt.s32.totalorder %v243, 4
    %v266 = vsel %vm262, %v246, %v249
    %v267 = vsel %vm265, %v255, 2102212464
    %v268 = vsel %vm264, %v252, %v267
    %v269 = vsel %vm263, %v266, %v268
    %v270 = vsel %vm262, %v249, %v252
    %v271 = vsel %vm265, %v258, 920167782
    %v272 = vsel %vm264, %v255, %v271
    %v273 = vsel %vm263, %v270, %v272
    %v274 = vsel %vm262, %v252, %v255
    %v275 = vsel %vm265, %v261, 1326507024
    %v276 = vsel %vm264, %v258, %v275
    %v277 = vsel %vm263, %v274, %v276
    %v278 = vshll.u32 %v238, 8
    %v279 = vmul.u32.u64.compose %v278, %v277
    %v280 = vextract.low.u32 %v279
    %v281 = vextract.high.u32 %v279
    %v282 = vmul.u32.u64.compose %v278, %v273
    %v283 = vextract.low.u32 %v282
    %v284 = vextract.high.u32 %v282
    %v285 = vmul.u32 %v278, %v269
    %v286 = vadd.s32 %v281, %v283
    %vm287 = vc.u32 %v281, %v283
    %v288 = vadd.s32 %v284, 1
    %v289 = vsel %vm287, %v288, %v284
    %v290 = vadd.s32 %v285, %v289
    %v291 = vadd.s32 %v290, 536870912
    %v292 = vshrl.u32 %v291, 30
    %v293 = vshll.u32 %v292, 30
    %v294 = vsub.s32 %v290, %v293
    %vm295 = vcmp.lt.s32.totalorder %v294, 0
    %v296 = vsub.s32 0, %v294
    %v297 = vsel %vm295, %v296, %v294
    %v298 = vclz %v297
    %v299 = vsub.s32 %v298, 2
    %vm300 = vcmp.gt.s32.totalorder 0, %v299
    %v301 = vsel %vm300, 0, %v299
    %v302 = vsub.s32 32, %v301
    %v303 = vshll.u32 %v294, %v301
    %v304 = vshrl.u32 %v286, %v302
    %v305 = vor.u32 %v303, %v304
    %v306 = vsub.s32 4294967266, %v301
    %v307 = vadd.s32 %v306, 127
    %v308 = vshll.u32 %v307, 23
    %v309 = vor.u32 4788187, %v308
    %v310 = vand.u32 2147483647, %v309
    %v312 = vcvt.s32.f32 %v305
    %v313 = vmul.f32 %v312, %v310
    %v314 = vxor.u32 %v313, 2147483648
    %v315 = vsel %vm232, %v314, %v313
    %v316 = vsub.s32 4, %v292
    %v317 = vsel %vm232, %v316, %v292
    %v318 = vsel %vm231, %v125, %v315
    %v319 = vsel %vm231, 0, %v317
    %v320 = vcosq.f32.pop %v318
    %v321 = vsinq.f32.pop %v318
    %vm322 = vweird.f32 %v125
    %v323 = vand.u32 %v319, 3
    %vm324 = vcmp.lt.s32.totalorder %v323, 2
    %vm325 = vcmp.eq.s32.totalorder %v323, 0
    %v326 = vxor.u32 %v321, 2147483648
    %v327 = vsel %vm325, %v320, %v326
    %vm328 = vcmp.eq.s32.totalorder %v323, 2
    %v329 = vxor.u32 %v320, 2147483648
    %v330 = vsel %vm328, %v329, %v321
    %v331 = vsel %vm324, %v327, %v330
    %v332 = vsel %vm322, nan, %v331
    %v333 = vld [vmem:[%s3] sm:$0x1]
    %vm334 = vcmp.gt.f32.partialorder %v333, 0.5
    %v335 = vsel %vm334, 1, 0
    %v336 = vlaneseq
    %v337 = vshrl.u32 %v336, 7
    %v338 = vsub.s32 0, %v337
    %v339 = vrot.slane %v335, %v338
    %vm340 = vcmp.eq.s32.totalorder %v339, 1
    %v341 = vsel %vm340, %v229, %v332
    %342 = vst [vmem:[#allocation7] sm:$0xff] %v341
    // Predicated region
    $region26: #{tpu_custom_call.1} parent=1 // pred_check
      _
    $region27: #{tpu_custom_call.1} parent=1 // pred_check_branch
      %344 = sbr.rel (0) target = $region29
    $region28: #{tpu_custom_call.1} parent=1 // pred_region
      %s346 = ssub.s32 128, 128
      %347 = vsyncadd [#allocation4], %s346
      %s349 = sshll.u32 [#allocation7], 4
      %s350 = int_to_ptr.vmem [resolvable:$true] %s349
      %352 = dma.vmem_to_hbm [thread:$0]  %s350, 128, %s4, [#allocation4]
    $region29: #{tpu_custom_call.1} parent=1 // pred_fallthru
      _
    // Predicated region
    $region30: #{tpu_custom_call.1} parent=1 // pred_check
      _
    $region31: #{tpu_custom_call.1} parent=1 // pred_check_branch
      %354 = sbr.rel (0) target = $region33
    $region32: #{tpu_custom_call.1} parent=1 // pred_region
      %355 = dma.done [#allocation4], 128
    $region33: #{tpu_custom_call.1} parent=1 // pred_fallthru
      _
    %356 = vsyncpa [#allocation3], 1
    %357 = vsyncpa [#allocation6], 1
    %358 = vsyncpa [#allocation4], 1

</llo_original>
